<compile_context>
chip_gen: v5e
topology: v5e:2x2
jax: 0.10.0
libtpu: 0.0.40
codegen_flags: <defaults>
</compile_context>

<pallas_src>
import functools

import jax
import jax.numpy as jnp
from jax.experimental import pallas as pl
from jax.experimental.pallas import tpu as pltpu


def _round_up(x: int, m: int) -> int:
    return ((x + m - 1) // m) * m


def _matmul_bias_kernel(p_ref, w_ref, b_ref, o_ref):
    # p_ref: (tm, K) patches tile, w_ref: (K, tn) weight tile, b_ref: (1, tn)
    # f32 bias tile.  K stays un-tiled, so there is no reduction grid axis and
    # no accumulator scratch / pl.when init is needed.
    acc = jnp.dot(p_ref[...], w_ref[...], preferred_element_type=jnp.float32)
    o_ref[...] = (acc + b_ref[...]).astype(o_ref.dtype)


def patch_embeddings(x, weight, bias, patch_size, *,
                     compute_dtype=jnp.bfloat16,
                     tm_max=512, tn_max=512,
                     vmem_budget_bytes=24 * 1024 * 1024):
    """x: (B, C, H, W) NCHW.  weight: (d_model, C, ps, ps) (PyTorch conv layout).
    bias: (d_model,).  Returns (B, (H//ps)*(W//ps), d_model)."""
    B, C, H, W = x.shape
    d_model = weight.shape[0]
    ps = patch_size
    nh, nw = H // ps, W // ps
    num_patches = nh * nw
    M = B * num_patches
    K = C * ps * ps
    N = d_model
    out_dtype = x.dtype

    compute_dtype = jnp.dtype(compute_dtype)
    in_bytes = compute_dtype.itemsize
    out_bytes = jnp.dtype(out_dtype).itemsize
    sub = 16 if in_bytes == 2 else 8          # sublane multiple for the dtype

    # --- patch extraction (layout glue; fusible into the pallas operand) ----
    # (B, C, nh, ps, nw, ps) -> (B, nh, nw, C, ps, ps) -> (M, K); the
    # (C, kh, kw) flatten order matches PyTorch's conv-weight flatten order.
    patches = x.reshape(B, C, nh, ps, nw, ps).transpose(0, 2, 4, 1, 3, 5)
    patches = patches.reshape(M, K).astype(compute_dtype)   # bf16 halves HBM bytes
    w_mat = weight.reshape(d_model, K).T.astype(compute_dtype)
    b_mat = bias.reshape(1, d_model).astype(jnp.float32)    # bias add stays f32

    # --- lane-dense / sublane-aligned padding + tile selection --------------
    N_pad = _round_up(N, 128)                 # lane-dense output (no vst.msk)
    tn = min(tn_max, N_pad)
    if N_pad % tn != 0:
        tn = 128                              # 128 always divides N_pad
    tm = min(tm_max, _round_up(M, sub))

    def _tiles_bytes(tm_, tn_):               # double-buffered input/output tiles
        return 2 * (tm_ * K * in_bytes + K * tn_ * in_bytes
                    + tn_ * 4 + tm_ * tn_ * out_bytes)

    # Shrink tm until the pipelined working set fits the (v7x-safe) budget.
    while tm > sub and _tiles_bytes(tm, tn) > vmem_budget_bytes:
        tm //= 2
    tm = max(sub, _round_up(tm, sub))
    M_pad = _round_up(M, tm)

    if M_pad != M:
        patches = jnp.pad(patches, ((0, M_pad - M), (0, 0)))
    if N_pad != N:
        w_mat = jnp.pad(w_mat, ((0, 0), (0, N_pad - N)))
        b_mat = jnp.pad(b_mat, ((0, 0), (0, N_pad - N)))

    grid = (M_pad // tm, N_pad // tn)

    cost = pl.CostEstimate(
        flops=2 * M_pad * K * N_pad,
        transcendentals=0,
        bytes_accessed=(M_pad * K * in_bytes + K * N_pad * in_bytes
                        + N_pad * 4 + M_pad * N_pad * out_bytes))

    out = pl.pallas_call(
        _matmul_bias_kernel,
        out_shape=jax.ShapeDtypeStruct((M_pad, N_pad), out_dtype),
        grid_spec=pltpu.PrefetchScalarGridSpec(
            num_scalar_prefetch=0,
            grid=grid,
            in_specs=[
                pl.BlockSpec((tm, K), lambda i, j: (i, 0)),   # patches tile
                pl.BlockSpec((K, tn), lambda i, j: (0, j)),   # weight tile
                pl.BlockSpec((1, tn), lambda i, j: (0, j)),   # bias tile
            ],
            out_specs=pl.BlockSpec((tm, tn), lambda i, j: (i, j)),
        ),
        compiler_params=pltpu.CompilerParams(
            dimension_semantics=("parallel", "parallel"),  # megacore-shardable
            vmem_limit_bytes=32 * 1024 * 1024,
            allow_input_fusion=[True, False, False],       # fuse patchify transpose
        ),
        cost_estimate=cost,
    )(patches, w_mat, b_mat)

    return out[:M, :N].reshape(B, num_patches, d_model)


if __name__ == "__main__":
    # Small shapes consistent with the module: batch=2, in_channels=4,
    # spatial 16x16, patch_size=4 -> 16 patches, d_model=32.
    B, C, H, W = 2, 4, 16, 16
    patch_size = 4
    d_model = 32

    key = jax.random.PRNGKey(0)
    kx, kw, kb = jax.random.split(key, 3)

    x = jax.random.normal(kx, (B, C, H, W), dtype=jnp.float32)
    # Shapes from nn.Conv2d(in_channels, d_model, kernel_size=ps, stride=ps).
    fan_in = C * patch_size * patch_size
    bound = 1.0 / (fan_in ** 0.5)
    weight = jax.random.uniform(kw, (d_model, C, patch_size, patch_size),
                                dtype=jnp.float32, minval=-bound, maxval=bound)
    bias = jax.random.uniform(kb, (d_model,), dtype=jnp.float32,
                              minval=-bound, maxval=bound)

    f_bf16 = jax.jit(functools.partial(patch_embeddings, patch_size=patch_size,
                                       compute_dtype=jnp.bfloat16))
    f_f32 = jax.jit(functools.partial(patch_embeddings, patch_size=patch_size,
                                      compute_dtype=jnp.float32))

    out = f_bf16(x, weight, bias)          # default (fast) path
    jax.block_until_ready(out)
    out_f32 = f_f32(x, weight, bias)       # strict-parity path for validation
    jax.block_until_ready(out_f32)

    # Reference: plain-JAX conv with the same semantics as torch Conv2d.
    ref = jax.lax.conv_general_dilated(
        x, weight, window_strides=(patch_size, patch_size), padding="VALID",
        dimension_numbers=("NCHW", "OIHW", "NCHW"))
    ref = ref + bias.reshape(1, d_model, 1, 1)
    Bn, Cn, Hn, Wn = ref.shape
    ref = ref.reshape(Bn, Cn, Hn * Wn).transpose(0, 2, 1)   # b c h w -> b (h w) c

    num_patches = (H // patch_size) * (W // patch_size)
    assert out.shape == (B, num_patches, d_model)
    assert jnp.allclose(out_f32, ref, atol=1e-4, rtol=1e-4), "f32 path mismatch"
    assert jnp.allclose(out.astype(jnp.float32), ref, atol=5e-2, rtol=5e-2), \
        "bf16 path mismatch"

    print("KERNEL_OK")
</pallas_src>

<mosaic_0001>
module attributes {stable_mosaic.version = 11 : i64} {
  func.func @_matmul_bias_kernel(%arg0: i32, %arg1: i32, %arg2: memref<32x64xbf16, #tpu.memory_space<vmem>>, %arg3: memref<64x128xbf16, #tpu.memory_space<vmem>>, %arg4: memref<1x128xf32, #tpu.memory_space<vmem>>, %arg5: memref<32x128xf32, #tpu.memory_space<vmem>>) attributes {dimension_semantics = [#tpu.dimension_semantics<parallel>, #tpu.dimension_semantics<parallel>], iteration_bounds = array<i64: 1, 1>, scalar_prefetch = 0 : i64, scratch_operands = 0 : i64, tpu.core_type = #tpu.core_type<tc>, window_params = [{transform_indices = @transform_0, window_bounds = array<i64: 32, 64>}, {transform_indices = @transform_1, window_bounds = array<i64: 64, 128>}, {transform_indices = @transform_2, window_bounds = array<i64: 1, 128>}, {transform_indices = @transform_3, window_bounds = array<i64: 32, 128>}]} {
    %c0 = arith.constant 0 : index
    %c0_0 = arith.constant 0 : index
    %0 = vector.load %arg2[%c0, %c0_0] : memref<32x64xbf16, #tpu.memory_space<vmem>>, vector<32x64xbf16>
    %c0_1 = arith.constant 0 : index
    %c0_2 = arith.constant 0 : index
    %1 = vector.load %arg3[%c0_1, %c0_2] : memref<64x128xbf16, #tpu.memory_space<vmem>>, vector<64x128xbf16>
    %cst = arith.constant dense<0.000000e+00> : vector<32x128xf32>
    %2 = tpu.matmul %0, %1, %cst {dimension_numbers = #tpu.dot_dimension_numbers<[1], [0], [0], [1], [0, 0, 1, 1], [], []>} : vector<32x64xbf16>, vector<64x128xbf16>, vector<32x128xf32> -> vector<32x128xf32>
    %c0_3 = arith.constant 0 : index
    %c0_4 = arith.constant 0 : index
    %3 = vector.load %arg4[%c0_3, %c0_4] : memref<1x128xf32, #tpu.memory_space<vmem>>, vector<1x128xf32>
    %4 = vector.broadcast %3 : vector<1x128xf32> to vector<32x128xf32>
    %5 = arith.addf %2, %4 : vector<32x128xf32>
    %c0_5 = arith.constant 0 : index
    %c0_6 = arith.constant 0 : index
    %6 = vector.load %arg5[%c0_5, %c0_6] : memref<32x128xf32, #tpu.memory_space<vmem>>, vector<32x128xf32>
    tpu.vector_store %arg5[%c0_5, %c0_6], %5 {strides = array<i32>} : memref<32x128xf32, #tpu.memory_space<vmem>>, vector<32x128xf32>,
    return
  }
  func.func @transform_0(%arg0: i32, %arg1: i32) -> (i32, i32) {
    %c0_i32 = arith.constant 0 : i32
    %c0_i32_0 = arith.constant 0 : i32
    return %arg0, %c0_i32 : i32, i32
  }
  func.func @transform_1(%arg0: i32, %arg1: i32) -> (i32, i32) {
    %c0_i32 = arith.constant 0 : i32
    %c0_i32_0 = arith.constant 0 : i32
    return %c0_i32, %arg1 : i32, i32
  }
  func.func @transform_2(%arg0: i32, %arg1: i32) -> (i32, i32) {
    %c0_i32 = arith.constant 0 : i32
    %c0_i32_0 = arith.constant 0 : i32
    return %c0_i32, %arg1 : i32, i32
  }
  func.func @transform_3(%arg0: i32, %arg1: i32) -> (i32, i32) {
    %c0_i32 = arith.constant 0 : i32
    return %arg0, %arg1 : i32, i32
  }
}

</mosaic_0001>

<llo_original>
// kernel: patch_embeddings.1
$region0: #{patch_embeddings.1}
  #allocation0 [shape = 'u32[]', space=smem, size = 0x4, offset = 0x4, fixed_abs, tag = 'smem constant byte address 0x4 - core index']
  #allocation1 [shape = 'u32[72,128]{1,0:T(1,128)}', space=vmem, size = 0x9000, scoped, tag = 'internal scratch']
  %s0 = inlined_call_operand.vmem [shape: bf16[32,64], index: 0, kind: input, shape index: {}]
  %s1 = inlined_call_operand.vmem [shape: bf16[64,128], index: 1, kind: input, shape index: {}]
  %s2 = inlined_call_operand.vmem [shape: f32[1,128], index: 2, kind: input, shape index: {}]
  %s3 = inlined_call_operand.hbm [shape: f32[32,128], index: 3, kind: output, shape index: {}]
  %s4 = sld [smem:[#allocation0]]
  $region22: #{patch_embeddings.1} parent=0
    _
  %s6 = ssub.s32 1, %s4
  %s7 = scalar_select 0, %s6, %s4
  $region1: #{patch_embeddings.1} parent=0
    #allocation2 [shape = 'u8[16384]{0}', space=vmem, size = 0x4000, scoped, tag = 'output window, operand 0, single buffered']
    #allocation3 [shape = 's32[1]{0}', space=sflag, size = 0x4, scoped, tag = 'scoped memory for patch_embeddings.1']
    %8 = vsyncpa [#allocation3], 0
    // Predicated region
    $region2: #{patch_embeddings.1} parent=1 // pred_check
      _
    $region3: #{patch_embeddings.1} parent=1 // pred_check_branch
      %10 = sbr.rel (0) target = $region5
    $region4: #{patch_embeddings.1} parent=1 // pred_region
      _
    $region5: #{patch_embeddings.1} parent=1 // pred_fallthru
      _
    // Predicated region
    $region6: #{patch_embeddings.1} parent=1 // pred_check
      _
    $region7: #{patch_embeddings.1} parent=1 // pred_check_branch
      %12 = sbr.rel (0) target = $region9
    $region8: #{patch_embeddings.1} parent=1 // pred_region
      _
    $region9: #{patch_embeddings.1} parent=1 // pred_fallthru
      _
    // Predicated region
    $region10: #{patch_embeddings.1} parent=1 // pred_check
      _
    $region11: #{patch_embeddings.1} parent=1 // pred_check_branch
      %14 = sbr.rel (0) target = $region13
    $region12: #{patch_embeddings.1} parent=1 // pred_region
      _
    $region13: #{patch_embeddings.1} parent=1 // pred_fallthru
      _
    %v16 = vld [vmem:[%s0] sm:$0xf]
    %v17 = vld [vmem:[%s0 + $0x4] sm:$0xf]
    %v18 = vld [vmem:[%s0 + $0x8] sm:$0xf]
    %v19 = vld [vmem:[%s0 + $0xc] sm:$0xf]
    %v20 = vld [vmem:[%s1] sm:$0xf]
    %v21 = vld [vmem:[%s1 + $0x4] sm:$0xf]
    %v22 = vld [vmem:[%s1 + $0x8] sm:$0xf]
    %v23 = vld [vmem:[%s1 + $0xc] sm:$0xf]
    %v24 = vld [vmem:[%s1 + $0x10] sm:$0xf]
    %v25 = vld [vmem:[%s1 + $0x14] sm:$0xf]
    %v26 = vld [vmem:[%s1 + $0x18] sm:$0xf]
    %v27 = vld [vmem:[%s1 + $0x1c] sm:$0xf]
    %v28 = vld [vmem:[%s2] sm:$0x1]
    %v30 = vperm.slane %v28, 0
    %v36 = vunpack.c.l.b16 %v16
    %v37 = vunpack.c.l.b16 %v17
    %v38 = vunpack.c.l.b16 %v18
    %v39 = vunpack.c.l.b16 %v19
    %v40 = vpack.c.b16 %v37, %v36
    %v41 = vpack.c.b16 %v39, %v38
    %v50 = vunpack.c.l.b16 %v20
    %v51 = vunpack.c.l.b16 %v21
    %v52 = vunpack.c.l.b16 %v22
    %v53 = vunpack.c.l.b16 %v23
    %v54 = vunpack.c.l.b16 %v24
    %v55 = vunpack.c.l.b16 %v25
    %v56 = vunpack.c.l.b16 %v26
    %v57 = vunpack.c.l.b16 %v27
    %v58 = vpack.c.b16 %v51, %v50
    %v59 = vpack.c.b16 %v53, %v52
    %v60 = vpack.c.b16 %v55, %v54
    %v61 = vpack.c.b16 %v57, %v56
    %vm66 = vcmask 523264
    %v68 = vsel %vm66, %v40, 0
    %v71 = vsel %vm66, %v41, 0
    %73 = vmatpush.bf16.msra.mxu0 0
    %74 = vmatpush.bf16.msra.mxu0 0
    %75 = vmatpush.bf16.msra.mxu0 0
    %76 = vmatpush.bf16.msra.mxu0 0
    %77 = vmatpush.bf16.msra.mxu0 %v61
    %78 = vmatpush.bf16.msra.mxu0 %v60
    %79 = vmatpush.bf16.msra.mxu0 %v59
    %80 = vmatpush.bf16.msra.mxu0 %v58
    %81 = vmatmul.bf16.gmra.mxu0 %v68
    %v82 = vpop.f32.mrf.mxu0
    %v83 = vadd.f32 %v30, %v82
    %v84 = vpop.f32.mrf.mxu0
    %v85 = vadd.f32 %v30, %v84
    %86 = vmatmul.bf16.gmra.mxu0 %v71
    %v87 = vpop.f32.mrf.mxu0
    %v88 = vadd.f32 %v30, %v87
    %v89 = vpop.f32.mrf.mxu0
    %v90 = vadd.f32 %v30, %v89
    %91 = vdwg.mxu0
    %92 = vst [vmem:[#allocation2] sm:$0xff] %v83
    %93 = vst [vmem:[#allocation2 + $0x8] sm:$0xff] %v85
    %94 = vst [vmem:[#allocation2 + $0x10] sm:$0xff] %v88
    %95 = vst [vmem:[#allocation2 + $0x18] sm:$0xff] %v90
    // Predicated region
    $region14: #{patch_embeddings.1} parent=1 // pred_check
      _
    $region15: #{patch_embeddings.1} parent=1 // pred_check_branch
      %97 = sbr.rel (0) target = $region17
    $region16: #{patch_embeddings.1} parent=1 // pred_region
      %99 = vsyncadd [#allocation3], 0
      %s100 = sshll.u32 [#allocation2], 4
      %s101 = int_to_ptr.vmem [resolvable:$true] %s100
      %s102 = sshll.u32 %s3, 4
      %s103 = int_to_ptr.hbm [resolvable:$true] %s102
      %108 = dma.vmem_to_hbm [thread:$0]  %s101, 512, %s103, [#allocation3], 128, 128, 8
    $region17: #{patch_embeddings.1} parent=1 // pred_fallthru
      _
    // Predicated region
    $region18: #{patch_embeddings.1} parent=1 // pred_check
      _
    $region19: #{patch_embeddings.1} parent=1 // pred_check_branch
      %110 = sbr.rel (0) target = $region21
    $region20: #{patch_embeddings.1} parent=1 // pred_region
      %112 = dma.done [#allocation3], 512
    $region21: #{patch_embeddings.1} parent=1 // pred_fallthru
      _
    %113 = vsyncpa [#allocation3], 1

</llo_original>
